<compile_context>
chip_gen: v5e
topology: v5e:2x2
jax: 0.10.0
libtpu: 0.0.40
codegen_flags: <defaults>
</compile_context>

<pallas_src>
import functools

import jax
import jax.numpy as jnp
import numpy as np
from jax.experimental import pallas as pl
from jax.experimental.pallas import tpu as pltpu


# ----------------------------------------------------------------------------
# Pallas kernel: one row-tile of the pairwise losses, fully reduced in-kernel
# ----------------------------------------------------------------------------
def _pairwise_tile_kernel(pred_c_ref, psi_c_ref, u_c_ref, eid_c_ref,
                          pred_r_ref, psi_r_ref, u_r_ref, eid_r_ref,
                          out_ref, *, thr, margin):
    pred_c = pred_c_ref[...]      # (TR, 1)  predicted logits (rows i)
    psi_c = psi_c_ref[...]        # (TR, 1)  original PSI (NaN on padded rows)
    u_c = u_c_ref[...]            # (TR, 1)  pred - logit(PSI)
    eid_c = eid_c_ref[...]        # (TR, 1)  int32 event id
    pred_r = pred_r_ref[...]      # (1, NP)  predicted logits (cols j)
    psi_r = psi_r_ref[...]        # (1, NP)  original PSI (NaN on padded cols)
    u_r = u_r_ref[...]            # (1, NP)  pred - logit(PSI)
    eid_r = eid_r_ref[...]        # (1, NP)  int32 event id

    # ori_true_diff[i, j] = psi[i] - psi[j]; NaN padding makes every padded
    # pair fail the threshold compare, so no explicit validity masks needed.
    otd = psi_c - psi_r                           # (TR, NP)
    abs_otd = jnp.abs(otd)
    vp = abs_otd >= thr                           # valid pairs (all-pairs MSE)

    # All-pairs MSE partials: (pred_i-pred_j)-(psil_i-psil_j) == u_i - u_j.
    d = u_c - u_r
    mse_sum = jnp.sum(jnp.where(vp, d * d, 0.0))
    mse_cnt = jnp.sum(jnp.where(vp, 1.0, 0.0))

    # Event-level margin ranking: pairs with same event_id and |dPSI| >= thr.
    pd = pred_c - pred_r                          # pred_diff[i, j]
    vr = vp & (eid_c == eid_r)
    # sign(otd) * pd (when otd == 0 the |otd| weight is 0, so branch is moot)
    signed_pd = jnp.where(otd > 0.0, pd, -pd)
    hinge = jnp.maximum(margin - signed_pd, 0.0)
    rank_sum = jnp.sum(jnp.where(vr, hinge * abs_otd, 0.0))
    rank_cnt = jnp.sum(jnp.where(vr, 1.0, 0.0))

    lanes = out_ref.shape[-1]
    out_ref[:, 0:1, :] = jnp.broadcast_to(mse_sum, (1, 1, lanes))
    out_ref[:, 1:2, :] = jnp.broadcast_to(mse_cnt, (1, 1, lanes))
    out_ref[:, 2:3, :] = jnp.broadcast_to(rank_sum, (1, 1, lanes))
    out_ref[:, 3:4, :] = jnp.broadcast_to(rank_cnt, (1, 1, lanes))


def _pick_row_tile(np0):
    # Keep per-intermediate (TR, NP) slabs at <= ~2 MiB f32 so the handful of
    # live temporaries stays far below scoped VMEM on v5e/v6e/v7x, while using
    # as few grid steps as possible (per-step overhead ~0.35 us).
    budget_elems = 512 * 1024
    cap = max(8, min(1024, np0, budget_elems // np0))
    tr = 8
    while tr * 2 <= cap:
        tr *= 2
    return tr


# ----------------------------------------------------------------------------
# Wrapper: BCE (O(N), plain JAX) + tiled pairwise kernel + tiny final reduction
# ----------------------------------------------------------------------------
def pairwise_mse_ranking_bce_loss(pred_psi_val, psi_val, event_id, *,
                                  dPSI_threshold,
                                  mse_loss_weight_multiplier=0.001,
                                  margin=0.0,
                                  ranking_loss_weight_multiplier=1.0,
                                  use_BCE_loss_only=False):
    pred = jnp.asarray(pred_psi_val, jnp.float32).reshape(-1)
    psi = jnp.asarray(psi_val, jnp.float32).reshape(-1)
    n = pred.shape[0]

    # BCE-with-logits (mean). O(N): stays in the wrapper, XLA fuses it.
    bce = jnp.mean(jnp.maximum(pred, 0.0) - pred * psi
                   + jnp.log1p(jnp.exp(-jnp.abs(pred))))
    if use_BCE_loss_only:
        return bce

    eid = jnp.asarray(event_id, jnp.int32).reshape(-1)

    # torch.special.logit(psi, eps=1e-7): clamp then log(p / (1 - p)).  O(N).
    eps = 1e-7
    p = jnp.clip(psi, eps, 1.0 - eps)
    psil = jnp.log(p) - jnp.log1p(-p)
    u = pred - psil          # hoisted so the N^2 body does (u_i - u_j) directly

    # Padding. NaN PSI self-masks every padded pair via the threshold compare.
    np0 = max(128, ((n + 127) // 128) * 128)
    tr = _pick_row_tile(np0)
    tile_align = max(128, tr)
    NP = ((np0 + tile_align - 1) // tile_align) * tile_align
    pad = NP - n

    pred_p = jnp.pad(pred, (0, pad))
    psi_p = jnp.pad(psi, (0, pad), constant_values=np.nan)
    u_p = jnp.pad(u, (0, pad))
    eid_p = jnp.pad(eid, (0, pad), constant_values=np.int32(np.iinfo(np.int32).min))

    row = lambda v: v.reshape(1, NP)
    col = lambda v: v.reshape(NP, 1)

    num_tiles = NP // tr
    kernel = functools.partial(_pairwise_tile_kernel,
                               thr=float(dPSI_threshold),
                               margin=float(margin))

    col_spec = pl.BlockSpec((tr, 1), lambda i: (i, 0))
    row_spec = pl.BlockSpec((1, NP), lambda i: (0, 0))   # resident, DMA'd once

    partials = pl.pallas_call(
        kernel,
        out_shape=jax.ShapeDtypeStruct((num_tiles, 4, 128), jnp.float32),
        grid_spec=pltpu.PrefetchScalarGridSpec(
            num_scalar_prefetch=0,
            grid=(num_tiles,),
            in_specs=[col_spec, col_spec, col_spec, col_spec,
                      row_spec, row_spec, row_spec, row_spec],
            out_specs=pl.BlockSpec((1, 4, 128), lambda i: (i, 0, 0)),
        ),
        compiler_params=pltpu.CompilerParams(
            dimension_semantics=("parallel",),
            vmem_limit_bytes=64 * 1024 * 1024),
    )(col(pred_p), col(psi_p), col(u_p), col(eid_p),
      row(pred_p), row(psi_p), row(u_p), row(eid_p))

    # Final (tiny) reduction + means + hoisted scalar multipliers.
    sums = jnp.sum(partials[:, :, 0], axis=0)             # (4,)
    mse_sum, mse_cnt, rank_sum, rank_cnt = sums[0], sums[1], sums[2], sums[3]
    mse_mean = jnp.where(mse_cnt > 0.0, mse_sum / jnp.maximum(mse_cnt, 1.0), 0.0)
    rank_mean = jnp.where(rank_cnt > 0.0, rank_sum / jnp.maximum(rank_cnt, 1.0), 0.0)
    return (bce
            + mse_mean * jnp.float32(mse_loss_weight_multiplier)
            + rank_mean * jnp.float32(ranking_loss_weight_multiplier))


# ----------------------------------------------------------------------------
# Pure NumPy reference (mirrors the PyTorch forward)
# ----------------------------------------------------------------------------
def _reference_loss(pred, psi, event_id, thr, mse_mult, margin, rank_mult,
                    use_bce_only):
    pred = np.asarray(pred, np.float32)
    psi = np.asarray(psi, np.float32)
    x = pred.astype(np.float64)
    y = psi.astype(np.float64)
    bce = np.maximum(x, 0.0) - x * y + np.log1p(np.exp(-np.abs(x)))
    loss = bce.mean()
    if use_bce_only:
        return loss

    eps = np.float32(1e-7)
    pcl = np.clip(psi, eps, np.float32(1.0) - eps)
    psil = (np.log(pcl) - np.log1p(-pcl)).astype(np.float32)

    pd = pred[:, None] - pred[None, :]
    td = psil[:, None] - psil[None, :]
    otd = psi[:, None] - psi[None, :]
    vp = np.abs(otd) >= np.float32(thr)
    if vp.any():
        se = (pd[vp].astype(np.float64) - td[vp].astype(np.float64)) ** 2
        loss += se.mean() * mse_mult

    em = np.asarray(event_id)[:, None] == np.asarray(event_id)[None, :]
    pdm, otdm = pd[em], otd[em]
    lab = np.sign(otdm).astype(np.float64)
    vr = np.abs(otdm) >= np.float32(thr)
    if vr.any():
        hinge = np.maximum(0.0, -lab[vr] * pdm[vr].astype(np.float64) + margin)
        loss += (hinge * np.abs(otdm[vr]).astype(np.float64) * rank_mult).mean()
    return loss


if __name__ == "__main__":
    key = jax.random.PRNGKey(0)
    k1, k2, k3, k4 = jax.random.split(key, 4)

    thr = 0.05
    mse_mult = 0.001
    margin = 0.0
    rank_mult = 1.0

    # Case 1: small batch, 3 events x 4 samples (single tile).
    n1 = 12
    event1 = jnp.array([7, 7, 7, 7, 3, 3, 3, 3, 9, 9, 9, 9], jnp.int32)
    psi1 = jax.random.uniform(k1, (n1,), jnp.float32)
    pred1 = jax.random.normal(k2, (n1,), jnp.float32)

    # Case 2: larger batch -> exercises the multi-tile ("parallel") grid path.
    n2 = 300
    event2 = jnp.arange(n2, dtype=jnp.int32) // 5
    psi2 = jax.random.uniform(k3, (n2,), jnp.float32)
    pred2 = jax.random.normal(k4, (n2,), jnp.float32)

    for pred, psi, eid in [(pred1, psi1, event1), (pred2, psi2, event2)]:
        loss = pairwise_mse_ranking_bce_loss(
            pred, psi, eid, dPSI_threshold=thr,
            mse_loss_weight_multiplier=mse_mult, margin=margin,
            ranking_loss_weight_multiplier=rank_mult)
        loss = jax.block_until_ready(loss)
        ref = _reference_loss(np.array(pred), np.array(psi), np.array(eid),
                              thr, mse_mult, margin, rank_mult, False)
        assert abs(float(loss) - float(ref)) < 1e-3 * max(1.0, abs(float(ref))), \
            (float(loss), float(ref))

    bce_only = pairwise_mse_ranking_bce_loss(
        pred1, psi1, event1, dPSI_threshold=thr,
        mse_loss_weight_multiplier=mse_mult, margin=margin,
        ranking_loss_weight_multiplier=rank_mult, use_BCE_loss_only=True)
    bce_only = jax.block_until_ready(bce_only)
    ref_bce = _reference_loss(np.array(pred1), np.array(psi1), np.array(event1),
                              thr, mse_mult, margin, rank_mult, True)
    assert abs(float(bce_only) - float(ref_bce)) < 1e-4 * max(1.0, abs(float(ref_bce))), \
        (float(bce_only), float(ref_bce))

    print("KERNEL_OK")
</pallas_src>

<mosaic_0001>
module attributes {stable_mosaic.version = 11 : i64} {
  func.func @_pairwise_tile_kernel(%arg0: i32, %arg1: memref<128x1xf32, #tpu.memory_space<vmem>>, %arg2: memref<128x1xf32, #tpu.memory_space<vmem>>, %arg3: memref<128x1xf32, #tpu.memory_space<vmem>>, %arg4: memref<128x1xi32, #tpu.memory_space<vmem>>, %arg5: memref<1x128xf32, #tpu.memory_space<vmem>>, %arg6: memref<1x128xf32, #tpu.memory_space<vmem>>, %arg7: memref<1x128xf32, #tpu.memory_space<vmem>>, %arg8: memref<1x128xi32, #tpu.memory_space<vmem>>, %arg9: memref<1x4x128xf32, #tpu.memory_space<vmem>>) attributes {dimension_semantics = [#tpu.dimension_semantics<parallel>], iteration_bounds = array<i64: 1>, scalar_prefetch = 0 : i64, scratch_operands = 0 : i64, tpu.core_type = #tpu.core_type<tc>, window_params = [{transform_indices = @transform_0, window_bounds = array<i64: 128, 1>}, {transform_indices = @transform_1, window_bounds = array<i64: 128, 1>}, {transform_indices = @transform_2, window_bounds = array<i64: 128, 1>}, {transform_indices = @transform_3, window_bounds = array<i64: 128, 1>}, {pipeline_mode = #tpu.pipeline_mode<synchronous>, transform_indices = @transform_4, window_bounds = array<i64: 1, 128>}, {pipeline_mode = #tpu.pipeline_mode<synchronous>, transform_indices = @transform_5, window_bounds = array<i64: 1, 128>}, {pipeline_mode = #tpu.pipeline_mode<synchronous>, transform_indices = @transform_6, window_bounds = array<i64: 1, 128>}, {pipeline_mode = #tpu.pipeline_mode<synchronous>, transform_indices = @transform_7, window_bounds = array<i64: 1, 128>}, {transform_indices = @transform_8, window_bounds = array<i64: 1, 4, 128>}]} {
    %c0 = arith.constant 0 : index
    %c0_0 = arith.constant 0 : index
    %0 = vector.load %arg1[%c0, %c0_0] : memref<128x1xf32, #tpu.memory_space<vmem>>, vector<128x1xf32>
    %c0_1 = arith.constant 0 : index
    %c0_2 = arith.constant 0 : index
    %1 = vector.load %arg2[%c0_1, %c0_2] : memref<128x1xf32, #tpu.memory_space<vmem>>, vector<128x1xf32>
    %c0_3 = arith.constant 0 : index
    %c0_4 = arith.constant 0 : index
    %2 = vector.load %arg3[%c0_3, %c0_4] : memref<128x1xf32, #tpu.memory_space<vmem>>, vector<128x1xf32>
    %c0_5 = arith.constant 0 : index
    %c0_6 = arith.constant 0 : index
    %3 = vector.load %arg4[%c0_5, %c0_6] : memref<128x1xi32, #tpu.memory_space<vmem>>, vector<128x1xi32>
    %c0_7 = arith.constant 0 : index
    %c0_8 = arith.constant 0 : index
    %4 = vector.load %arg5[%c0_7, %c0_8] : memref<1x128xf32, #tpu.memory_space<vmem>>, vector<1x128xf32>
    %c0_9 = arith.constant 0 : index
    %c0_10 = arith.constant 0 : index
    %5 = vector.load %arg6[%c0_9, %c0_10] : memref<1x128xf32, #tpu.memory_space<vmem>>, vector<1x128xf32>
    %c0_11 = arith.constant 0 : index
    %c0_12 = arith.constant 0 : index
    %6 = vector.load %arg7[%c0_11, %c0_12] : memref<1x128xf32, #tpu.memory_space<vmem>>, vector<1x128xf32>
    %c0_13 = arith.constant 0 : index
    %c0_14 = arith.constant 0 : index
    %7 = vector.load %arg8[%c0_13, %c0_14] : memref<1x128xi32, #tpu.memory_space<vmem>>, vector<1x128xi32>
    %8 = vector.broadcast %1 : vector<128x1xf32> to vector<128x128xf32>
    %9 = vector.broadcast %5 : vector<1x128xf32> to vector<128x128xf32>
    %10 = arith.subf %8, %9 : vector<128x128xf32>
    %11 = math.absf %10 : vector<128x128xf32>
    %cst = arith.constant 5.000000e-02 : f32
    %12 = vector.broadcast %cst : f32 to vector<128x128xf32>
    %13 = arith.cmpf oge, %11, %12 : vector<128x128xf32>
    %14 = vector.broadcast %2 : vector<128x1xf32> to vector<128x128xf32>
    %15 = vector.broadcast %6 : vector<1x128xf32> to vector<128x128xf32>
    %16 = arith.subf %14, %15 : vector<128x128xf32>
    %17 = arith.mulf %16, %16 : vector<128x128xf32>
    %cst_15 = arith.constant 0.000000e+00 : f32
    %18 = vector.broadcast %cst_15 : f32 to vector<128x128xf32>
    %19 = arith.select %13, %17, %18 : vector<128x128xi1>, vector<128x128xf32>
    %20 = vector.shape_cast %19 : vector<128x128xf32> to vector<1x128x128xf32>
    %cst_16 = arith.constant dense<0.000000e+00> : vector<1xf32>
    %21 = vector.multi_reduction <add>, %20, %cst_16 [1, 2] : vector<1x128x128xf32> to vector<1xf32>
    %22 = vector.shape_cast %21 : vector<1xf32> to vector<1x1x1xf32>
    %23 = vector.extract %22[0, 0, 0] : f32 from vector<1x1x1xf32>
    %cst_17 = arith.constant 1.000000e+00 : f32
    %cst_18 = arith.constant 0.000000e+00 : f32
    %24 = vector.broadcast %cst_17 : f32 to vector<128x128xf32>
    %25 = vector.broadcast %cst_18 : f32 to vector<128x128xf32>
    %26 = arith.select %13, %24, %25 : vector<128x128xi1>, vector<128x128xf32>
    %27 = vector.shape_cast %26 : vector<128x128xf32> to vector<1x128x128xf32>
    %cst_19 = arith.constant dense<0.000000e+00> : vector<1xf32>
    %28 = vector.multi_reduction <add>, %27, %cst_19 [1, 2] : vector<1x128x128xf32> to vector<1xf32>
    %29 = vector.shape_cast %28 : vector<1xf32> to vector<1x1x1xf32>
    %30 = vector.extract %29[0, 0, 0] : f32 from vector<1x1x1xf32>
    %31 = vector.broadcast %0 : vector<128x1xf32> to vector<128x128xf32>
    %32 = vector.broadcast %4 : vector<1x128xf32> to vector<128x128xf32>
    %33 = arith.subf %31, %32 : vector<128x128xf32>
    %34 = vector.broadcast %3 : vector<128x1xi32> to vector<128x128xi32>
    %35 = vector.broadcast %7 : vector<1x128xi32> to vector<128x128xi32>
    %36 = arith.cmpi eq, %34, %35 : vector<128x128xi32>
    %37 = arith.andi %13, %36 : vector<128x128xi1>
    %cst_20 = arith.constant 0.000000e+00 : f32
    %38 = vector.broadcast %cst_20 : f32 to vector<128x128xf32>
    %39 = arith.cmpf ogt, %10, %38 : vector<128x128xf32>
    %cst_21 = arith.constant 0.000000e+00 : f32
    %40 = vector.broadcast %cst_21 : f32 to vector<128x128xf32>
    %41 = arith.subf %40, %33 : vector<128x128xf32>
    %42 = arith.select %39, %33, %41 : vector<128x128xi1>, vector<128x128xf32>
    %cst_22 = arith.constant 0.000000e+00 : f32
    %43 = vector.broadcast %cst_22 : f32 to vector<128x128xf32>
    %44 = arith.subf %43, %42 : vector<128x128xf32>
    %cst_23 = arith.constant 0.000000e+00 : f32
    %45 = vector.broadcast %cst_23 : f32 to vector<128x128xf32>
    %46 = arith.maximumf %44, %45 : vector<128x128xf32>
    %47 = arith.mulf %46, %11 : vector<128x128xf32>
    %cst_24 = arith.constant 0.000000e+00 : f32
    %48 = vector.broadcast %cst_24 : f32 to vector<128x128xf32>
    %49 = arith.select %37, %47, %48 : vector<128x128xi1>, vector<128x128xf32>
    %50 = vector.shape_cast %49 : vector<128x128xf32> to vector<1x128x128xf32>
    %cst_25 = arith.constant dense<0.000000e+00> : vector<1xf32>
    %51 = vector.multi_reduction <add>, %50, %cst_25 [1, 2] : vector<1x128x128xf32> to vector<1xf32>
    %52 = vector.shape_cast %51 : vector<1xf32> to vector<1x1x1xf32>
    %53 = vector.extract %52[0, 0, 0] : f32 from vector<1x1x1xf32>
    %cst_26 = arith.constant 1.000000e+00 : f32
    %cst_27 = arith.constant 0.000000e+00 : f32
    %54 = vector.broadcast %cst_26 : f32 to vector<128x128xf32>
    %55 = vector.broadcast %cst_27 : f32 to vector<128x128xf32>
    %56 = arith.select %37, %54, %55 : vector<128x128xi1>, vector<128x128xf32>
    %57 = vector.shape_cast %56 : vector<128x128xf32> to vector<1x128x128xf32>
    %cst_28 = arith.constant dense<0.000000e+00> : vector<1xf32>
    %58 = vector.multi_reduction <add>, %57, %cst_28 [1, 2] : vector<1x128x128xf32> to vector<1xf32>
    %59 = vector.shape_cast %58 : vector<1xf32> to vector<1x1x1xf32>
    %60 = vector.extract %59[0, 0, 0] : f32 from vector<1x1x1xf32>
    %61 = vector.broadcast %23 : f32 to vector<1x1x128xf32>
    %c0_29 = arith.constant 0 : index
    %c0_30 = arith.constant 0 : index
    %c0_31 = arith.constant 0 : index
    %62 = vector.load %arg9[%c0_29, %c0_30, %c0_31] : memref<1x4x128xf32, #tpu.memory_space<vmem>>, vector<1x1x128xf32>
    tpu.vector_store %arg9[%c0_29, %c0_30, %c0_31], %61 {strides = array<i32>} : memref<1x4x128xf32, #tpu.memory_space<vmem>>, vector<1x1x128xf32>,
    %63 = vector.broadcast %30 : f32 to vector<1x1x128xf32>
    %c0_32 = arith.constant 0 : index
    %c1 = arith.constant 1 : index
    %c0_33 = arith.constant 0 : index
    %64 = vector.load %arg9[%c0_32, %c1, %c0_33] : memref<1x4x128xf32, #tpu.memory_space<vmem>>, vector<1x1x128xf32>
    tpu.vector_store %arg9[%c0_32, %c1, %c0_33], %63 {strides = array<i32>} : memref<1x4x128xf32, #tpu.memory_space<vmem>>, vector<1x1x128xf32>,
    %65 = vector.broadcast %53 : f32 to vector<1x1x128xf32>
    %c0_34 = arith.constant 0 : index
    %c2 = arith.constant 2 : index
    %c0_35 = arith.constant 0 : index
    %66 = vector.load %arg9[%c0_34, %c2, %c0_35] : memref<1x4x128xf32, #tpu.memory_space<vmem>>, vector<1x1x128xf32>
    tpu.vector_store %arg9[%c0_34, %c2, %c0_35], %65 {strides = array<i32>} : memref<1x4x128xf32, #tpu.memory_space<vmem>>, vector<1x1x128xf32>,
    %67 = vector.broadcast %60 : f32 to vector<1x1x128xf32>
    %c0_36 = arith.constant 0 : index
    %c3 = arith.constant 3 : index
    %c0_37 = arith.constant 0 : index
    %68 = vector.load %arg9[%c0_36, %c3, %c0_37] : memref<1x4x128xf32, #tpu.memory_space<vmem>>, vector<1x1x128xf32>
    tpu.vector_store %arg9[%c0_36, %c3, %c0_37], %67 {strides = array<i32>} : memref<1x4x128xf32, #tpu.memory_space<vmem>>, vector<1x1x128xf32>,
    return
  }
  func.func @transform_0(%arg0: i32) -> (i32, i32) {
    %c0_i32 = arith.constant 0 : i32
    %c0_i32_0 = arith.constant 0 : i32
    return %arg0, %c0_i32 : i32, i32
  }
  func.func @transform_1(%arg0: i32) -> (i32, i32) {
    %c0_i32 = arith.constant 0 : i32
    %c0_i32_0 = arith.constant 0 : i32
    return %arg0, %c0_i32 : i32, i32
  }
  func.func @transform_2(%arg0: i32) -> (i32, i32) {
    %c0_i32 = arith.constant 0 : i32
    %c0_i32_0 = arith.constant 0 : i32
    return %arg0, %c0_i32 : i32, i32
  }
  func.func @transform_3(%arg0: i32) -> (i32, i32) {
    %c0_i32 = arith.constant 0 : i32
    %c0_i32_0 = arith.constant 0 : i32
    return %arg0, %c0_i32 : i32, i32
  }
  func.func @transform_4(%arg0: i32) -> (i32, i32) {
    %c0_i32 = arith.constant 0 : i32
    %c0_i32_0 = arith.constant 0 : i32
    %c0_i32_1 = arith.constant 0 : i32
    return %c0_i32, %c0_i32_0 : i32, i32
  }
  func.func @transform_5(%arg0: i32) -> (i32, i32) {
    %c0_i32 = arith.constant 0 : i32
    %c0_i32_0 = arith.constant 0 : i32
    %c0_i32_1 = arith.constant 0 : i32
    return %c0_i32, %c0_i32_0 : i32, i32
  }
  func.func @transform_6(%arg0: i32) -> (i32, i32) {
    %c0_i32 = arith.constant 0 : i32
    %c0_i32_0 = arith.constant 0 : i32
    %c0_i32_1 = arith.constant 0 : i32
    return %c0_i32, %c0_i32_0 : i32, i32
  }
  func.func @transform_7(%arg0: i32) -> (i32, i32) {
    %c0_i32 = arith.constant 0 : i32
    %c0_i32_0 = arith.constant 0 : i32
    %c0_i32_1 = arith.constant 0 : i32
    return %c0_i32, %c0_i32_0 : i32, i32
  }
  func.func @transform_8(%arg0: i32) -> (i32, i32, i32) {
    %c0_i32 = arith.constant 0 : i32
    %c0_i32_0 = arith.constant 0 : i32
    %c0_i32_1 = arith.constant 0 : i32
    return %arg0, %c0_i32, %c0_i32_0 : i32, i32, i32
  }
}

</mosaic_0001>

<llo_original>
// kernel: tpu_custom_call.1
$region0: #{tpu_custom_call.1}
  #allocation0 [shape = 'u32[]', space=smem, size = 0x4, offset = 0x4, fixed_abs, tag = 'smem constant byte address 0x4 - core index']
  #allocation1 [shape = 'u32[72,128]{1,0:T(1,128)}', space=vmem, size = 0x9000, scoped, tag = 'internal scratch']
  %s0 = inlined_call_operand.vmem [shape: f32[128,1], index: 0, kind: input, shape index: {}]
  %s1 = inlined_call_operand.vmem [shape: f32[128,1], index: 1, kind: input, shape index: {}]
  %s2 = inlined_call_operand.vmem [shape: f32[128,1], index: 2, kind: input, shape index: {}]
  %s3 = inlined_call_operand.vmem [shape: s32[128,1], index: 3, kind: input, shape index: {}]
  %s4 = inlined_call_operand.vmem [shape: f32[1,128], index: 4, kind: input, shape index: {}]
  %s5 = inlined_call_operand.vmem [shape: f32[1,128], index: 5, kind: input, shape index: {}]
  %s6 = inlined_call_operand.vmem [shape: f32[1,128], index: 6, kind: input, shape index: {}]
  %s7 = inlined_call_operand.vmem [shape: s32[1,128], index: 7, kind: input, shape index: {}]
  %s8 = inlined_call_operand.hbm [shape: f32[1,4,128], index: 8, kind: output, shape index: {}]
  %s9 = sld [smem:[#allocation0]]
  $region42: #{tpu_custom_call.1} parent=0
    _
  %s11 = ssub.s32 1, %s9
  %s12 = scalar_select 0, %s11, %s9
  $region1: #{tpu_custom_call.1} parent=0
    #allocation2 [shape = 'u8[2048]{0}', space=vmem, size = 0x800, scoped, tag = 'output window, operand 0, single buffered']
    #allocation3 [shape = 's32[1]{0}', space=sflag, size = 0x4, scoped, tag = 'scoped memory for tpu_custom_call.1']
    %13 = vsyncpa [#allocation3], 0
    // Predicated region
    $region2: #{tpu_custom_call.1} parent=1 // pred_check
      _
    $region3: #{tpu_custom_call.1} parent=1 // pred_check_branch
      %15 = sbr.rel (0) target = $region5
    $region4: #{tpu_custom_call.1} parent=1 // pred_region
      _
    $region5: #{tpu_custom_call.1} parent=1 // pred_fallthru
      _
    // Predicated region
    $region6: #{tpu_custom_call.1} parent=1 // pred_check
      _
    $region7: #{tpu_custom_call.1} parent=1 // pred_check_branch
      %17 = sbr.rel (0) target = $region9
    $region8: #{tpu_custom_call.1} parent=1 // pred_region
      _
    $region9: #{tpu_custom_call.1} parent=1 // pred_fallthru
      _
    // Predicated region
    $region10: #{tpu_custom_call.1} parent=1 // pred_check
      _
    $region11: #{tpu_custom_call.1} parent=1 // pred_check_branch
      %19 = sbr.rel (0) target = $region13
    $region12: #{tpu_custom_call.1} parent=1 // pred_region
      _
    $region13: #{tpu_custom_call.1} parent=1 // pred_fallthru
      _
    // Predicated region
    $region14: #{tpu_custom_call.1} parent=1 // pred_check
      _
    $region15: #{tpu_custom_call.1} parent=1 // pred_check_branch
      %21 = sbr.rel (0) target = $region17
    $region16: #{tpu_custom_call.1} parent=1 // pred_region
      _
    $region17: #{tpu_custom_call.1} parent=1 // pred_fallthru
      _
    // Predicated region
    $region18: #{tpu_custom_call.1} parent=1 // pred_check
      _
    $region19: #{tpu_custom_call.1} parent=1 // pred_check_branch
      %23 = sbr.rel (0) target = $region21
    $region20: #{tpu_custom_call.1} parent=1 // pred_region
      _
    $region21: #{tpu_custom_call.1} parent=1 // pred_fallthru
      _
    // Predicated region
    $region22: #{tpu_custom_call.1} parent=1 // pred_check
      _
    $region23: #{tpu_custom_call.1} parent=1 // pred_check_branch
      %25 = sbr.rel (0) target = $region25
    $region24: #{tpu_custom_call.1} parent=1 // pred_region
      _
    $region25: #{tpu_custom_call.1} parent=1 // pred_fallthru
      _
    // Predicated region
    $region26: #{tpu_custom_call.1} parent=1 // pred_check
      _
    $region27: #{tpu_custom_call.1} parent=1 // pred_check_branch
      %27 = sbr.rel (0) target = $region29
    $region28: #{tpu_custom_call.1} parent=1 // pred_region
      _
    $region29: #{tpu_custom_call.1} parent=1 // pred_fallthru
      _
    // Predicated region
    $region30: #{tpu_custom_call.1} parent=1 // pred_check
      _
    $region31: #{tpu_custom_call.1} parent=1 // pred_check_branch
      %29 = sbr.rel (0) target = $region33
    $region32: #{tpu_custom_call.1} parent=1 // pred_region
      _
    $region33: #{tpu_custom_call.1} parent=1 // pred_fallthru
      _
    %v30 = vld [vmem:[%s0] sm:$0xff]
    %v31 = vld [vmem:[%s0 + $0x8] sm:$0xff]
    %v32 = vld [vmem:[%s0 + $0x10] sm:$0xff]
    %v33 = vld [vmem:[%s0 + $0x18] sm:$0xff]
    %v34 = vld [vmem:[%s0 + $0x20] sm:$0xff]
    %v35 = vld [vmem:[%s0 + $0x28] sm:$0xff]
    %v36 = vld [vmem:[%s0 + $0x30] sm:$0xff]
    %v37 = vld [vmem:[%s0 + $0x38] sm:$0xff]
    %v38 = vld [vmem:[%s0 + $0x40] sm:$0xff]
    %v39 = vld [vmem:[%s0 + $0x48] sm:$0xff]
    %v40 = vld [vmem:[%s0 + $0x50] sm:$0xff]
    %v41 = vld [vmem:[%s0 + $0x58] sm:$0xff]
    %v42 = vld [vmem:[%s0 + $0x60] sm:$0xff]
    %v43 = vld [vmem:[%s0 + $0x68] sm:$0xff]
    %v44 = vld [vmem:[%s0 + $0x70] sm:$0xff]
    %v45 = vld [vmem:[%s0 + $0x78] sm:$0xff]
    %v46 = vld [vmem:[%s1] sm:$0xff]
    %v47 = vld [vmem:[%s1 + $0x8] sm:$0xff]
    %v48 = vld [vmem:[%s1 + $0x10] sm:$0xff]
    %v49 = vld [vmem:[%s1 + $0x18] sm:$0xff]
    %v50 = vld [vmem:[%s1 + $0x20] sm:$0xff]
    %v51 = vld [vmem:[%s1 + $0x28] sm:$0xff]
    %v52 = vld [vmem:[%s1 + $0x30] sm:$0xff]
    %v53 = vld [vmem:[%s1 + $0x38] sm:$0xff]
    %v54 = vld [vmem:[%s1 + $0x40] sm:$0xff]
    %v55 = vld [vmem:[%s1 + $0x48] sm:$0xff]
    %v56 = vld [vmem:[%s1 + $0x50] sm:$0xff]
    %v57 = vld [vmem:[%s1 + $0x58] sm:$0xff]
    %v58 = vld [vmem:[%s1 + $0x60] sm:$0xff]
    %v59 = vld [vmem:[%s1 + $0x68] sm:$0xff]
    %v60 = vld [vmem:[%s1 + $0x70] sm:$0xff]
    %v61 = vld [vmem:[%s1 + $0x78] sm:$0xff]
    %v62 = vld [vmem:[%s2] sm:$0xff]
    %v63 = vld [vmem:[%s2 + $0x8] sm:$0xff]
    %v64 = vld [vmem:[%s2 + $0x10] sm:$0xff]
    %v65 = vld [vmem:[%s2 + $0x18] sm:$0xff]
    %v66 = vld [vmem:[%s2 + $0x20] sm:$0xff]
    %v67 = vld [vmem:[%s2 + $0x28] sm:$0xff]
    %v68 = vld [vmem:[%s2 + $0x30] sm:$0xff]
    %v69 = vld [vmem:[%s2 + $0x38] sm:$0xff]
    %v70 = vld [vmem:[%s2 + $0x40] sm:$0xff]
    %v71 = vld [vmem:[%s2 + $0x48] sm:$0xff]
    %v72 = vld [vmem:[%s2 + $0x50] sm:$0xff]
    %v73 = vld [vmem:[%s2 + $0x58] sm:$0xff]
    %v74 = vld [vmem:[%s2 + $0x60] sm:$0xff]
    %v75 = vld [vmem:[%s2 + $0x68] sm:$0xff]
    %v76 = vld [vmem:[%s2 + $0x70] sm:$0xff]
    %v77 = vld [vmem:[%s2 + $0x78] sm:$0xff]
    %v78 = vld [vmem:[%s3] sm:$0xff]
    %v79 = vld [vmem:[%s3 + $0x8] sm:$0xff]
    %v80 = vld [vmem:[%s3 + $0x10] sm:$0xff]
    %v81 = vld [vmem:[%s3 + $0x18] sm:$0xff]
    %v82 = vld [vmem:[%s3 + $0x20] sm:$0xff]
    %v83 = vld [vmem:[%s3 + $0x28] sm:$0xff]
    %v84 = vld [vmem:[%s3 + $0x30] sm:$0xff]
    %v85 = vld [vmem:[%s3 + $0x38] sm:$0xff]
    %v86 = vld [vmem:[%s3 + $0x40] sm:$0xff]
    %v87 = vld [vmem:[%s3 + $0x48] sm:$0xff]
    %v88 = vld [vmem:[%s3 + $0x50] sm:$0xff]
    %v89 = vld [vmem:[%s3 + $0x58] sm:$0xff]
    %v90 = vld [vmem:[%s3 + $0x60] sm:$0xff]
    %v91 = vld [vmem:[%s3 + $0x68] sm:$0xff]
    %v92 = vld [vmem:[%s3 + $0x70] sm:$0xff]
    %v93 = vld [vmem:[%s3 + $0x78] sm:$0xff]
    %v94 = vld [vmem:[%s4] sm:$0x1]
    %v95 = vld [vmem:[%s5] sm:$0x1]
    %v96 = vld [vmem:[%s6] sm:$0x1]
    %v97 = vld [vmem:[%s7] sm:$0x1]
    %99 = vset.pattern.permute.xlu0 0
    %100 = vperm.xlu0 %99, %v46
    %v101 = vpop.permute.xlu0 %100
    %104 = vset.pattern.permute.xlu0 0
    %105 = vperm.xlu0 %104, %v47
    %v106 = vpop.permute.xlu0 %105
    %109 = vset.pattern.permute.xlu0 0
    %110 = vperm.xlu0 %109, %v48
    %v111 = vpop.permute.xlu0 %110
    %114 = vset.pattern.permute.xlu0 0
    %115 = vperm.xlu0 %114, %v49
    %v116 = vpop.permute.xlu0 %115
    %119 = vset.pattern.permute.xlu0 0
    %120 = vperm.xlu0 %119, %v50
    %v121 = vpop.permute.xlu0 %120
    %124 = vset.pattern.permute.xlu0 0
    %125 = vperm.xlu0 %124, %v51
    %v126 = vpop.permute.xlu0 %125
    %129 = vset.pattern.permute.xlu0 0
    %130 = vperm.xlu0 %129, %v52
    %v131 = vpop.permute.xlu0 %130
    %134 = vset.pattern.permute.xlu0 0
    %135 = vperm.xlu0 %134, %v53
    %v136 = vpop.permute.xlu0 %135
    %139 = vset.pattern.permute.xlu0 0
    %140 = vperm.xlu0 %139, %v54
    %v141 = vpop.permute.xlu0 %140
    %144 = vset.pattern.permute.xlu0 0
    %145 = vperm.xlu0 %144, %v55
    %v146 = vpop.permute.xlu0 %145
    %149 = vset.pattern.permute.xlu0 0
    %150 = vperm.xlu0 %149, %v56
    %v151 = vpop.permute.xlu0 %150
    %154 = vset.pattern.permute.xlu0 0
    %155 = vperm.xlu0 %154, %v57
    %v156 = vpop.permute.xlu0 %155
    %159 = vset.pattern.permute.xlu0 0
    %160 = vperm.xlu0 %159, %v58
    %v161 = vpop.permute.xlu0 %160
    %164 = vset.pattern.permute.xlu0 0
    %165 = vperm.xlu0 %164, %v59
    %v166 = vpop.permute.xlu0 %165
    %169 = vset.pattern.permute.xlu0 0
    %170 = vperm.xlu0 %169, %v60
    %v171 = vpop.permute.xlu0 %170
    %174 = vset.pattern.permute.xlu0 0
    %175 = vperm.xlu0 %174, %v61
    %v176 = vpop.permute.xlu0 %175
    %v179 = vperm.slane %v95, 0
    %v181 = vsub.f32 %v101, %v179
    %v182 = vsub.f32 %v106, %v179
    %v183 = vsub.f32 %v111, %v179
    %v184 = vsub.f32 %v116, %v179
    %v185 = vsub.f32 %v121, %v179
    %v186 = vsub.f32 %v126, %v179
    %v187 = vsub.f32 %v131, %v179
    %v188 = vsub.f32 %v136, %v179
    %v189 = vsub.f32 %v141, %v179
    %v190 = vsub.f32 %v146, %v179
    %v191 = vsub.f32 %v151, %v179
    %v192 = vsub.f32 %v156, %v179
    %v193 = vsub.f32 %v161, %v179
    %v194 = vsub.f32 %v166, %v179
    %v195 = vsub.f32 %v171, %v179
    %v196 = vsub.f32 %v176, %v179
    %v197 = vand.u32 2147483647, %v181
    %v198 = vand.u32 2147483647, %v182
    %v199 = vand.u32 2147483647, %v183
    %v200 = vand.u32 2147483647, %v184
    %v201 = vand.u32 2147483647, %v185
    %v202 = vand.u32 2147483647, %v186
    %v203 = vand.u32 2147483647, %v187
    %v204 = vand.u32 2147483647, %v188
    %v205 = vand.u32 2147483647, %v189
    %v206 = vand.u32 2147483647, %v190
    %v207 = vand.u32 2147483647, %v191
    %v208 = vand.u32 2147483647, %v192
    %v209 = vand.u32 2147483647, %v193
    %v210 = vand.u32 2147483647, %v194
    %v211 = vand.u32 2147483647, %v195
    %v212 = vand.u32 2147483647, %v196
    %vm213 = vcmp.ge.f32.partialorder %v197, 0.05
    %vm214 = vcmp.ge.f32.partialorder %v198, 0.05
    %vm215 = vcmp.ge.f32.partialorder %v199, 0.05
    %vm216 = vcmp.ge.f32.partialorder %v200, 0.05
    %vm217 = vcmp.ge.f32.partialorder %v201, 0.05
    %vm218 = vcmp.ge.f32.partialorder %v202, 0.05
    %vm219 = vcmp.ge.f32.partialorder %v203, 0.05
    %vm220 = vcmp.ge.f32.partialorder %v204, 0.05
    %vm221 = vcmp.ge.f32.partialorder %v205, 0.05
    %vm222 = vcmp.ge.f32.partialorder %v206, 0.05
    %vm223 = vcmp.ge.f32.partialorder %v207, 0.05
    %vm224 = vcmp.ge.f32.partialorder %v208, 0.05
    %vm225 = vcmp.ge.f32.partialorder %v209, 0.05
    %vm226 = vcmp.ge.f32.partialorder %v210, 0.05
    %vm227 = vcmp.ge.f32.partialorder %v211, 0.05
    %vm228 = vcmp.ge.f32.partialorder %v212, 0.05
    %230 = vset.pattern.permute.xlu0 0
    %231 = vperm.xlu0 %230, %v62
    %v232 = vpop.permute.xlu0 %231
    %235 = vset.pattern.permute.xlu0 0
    %236 = vperm.xlu0 %235, %v63
    %v237 = vpop.permute.xlu0 %236
    %240 = vset.pattern.permute.xlu0 0
    %241 = vperm.xlu0 %240, %v64
    %v242 = vpop.permute.xlu0 %241
    %245 = vset.pattern.permute.xlu0 0
    %246 = vperm.xlu0 %245, %v65
    %v247 = vpop.permute.xlu0 %246
    %250 = vset.pattern.permute.xlu0 0
    %251 = vperm.xlu0 %250, %v66
    %v252 = vpop.permute.xlu0 %251
    %255 = vset.pattern.permute.xlu0 0
    %256 = vperm.xlu0 %255, %v67
    %v257 = vpop.permute.xlu0 %256
    %260 = vset.pattern.permute.xlu0 0
    %261 = vperm.xlu0 %260, %v68
    %v262 = vpop.permute.xlu0 %261
    %265 = vset.pattern.permute.xlu0 0
    %266 = vperm.xlu0 %265, %v69
    %v267 = vpop.permute.xlu0 %266
    %270 = vset.pattern.permute.xlu0 0
    %271 = vperm.xlu0 %270, %v70
    %v272 = vpop.permute.xlu0 %271
    %275 = vset.pattern.permute.xlu0 0
    %276 = vperm.xlu0 %275, %v71
    %v277 = vpop.permute.xlu0 %276
    %280 = vset.pattern.permute.xlu0 0
    %281 = vperm.xlu0 %280, %v72
    %v282 = vpop.permute.xlu0 %281
    %285 = vset.pattern.permute.xlu0 0
    %286 = vperm.xlu0 %285, %v73
    %v287 = vpop.permute.xlu0 %286
    %290 = vset.pattern.permute.xlu0 0
    %291 = vperm.xlu0 %290, %v74
    %v292 = vpop.permute.xlu0 %291
    %295 = vset.pattern.permute.xlu0 0
    %296 = vperm.xlu0 %295, %v75
    %v297 = vpop.permute.xlu0 %296
    %300 = vset.pattern.permute.xlu0 0
    %301 = vperm.xlu0 %300, %v76
    %v302 = vpop.permute.xlu0 %301
    %305 = vset.pattern.permute.xlu0 0
    %306 = vperm.xlu0 %305, %v77
    %v307 = vpop.permute.xlu0 %306
    %v310 = vperm.slane %v96, 0
    %v312 = vsub.f32 %v232, %v310
    %v313 = vsub.f32 %v237, %v310
    %v314 = vsub.f32 %v242, %v310
    %v315 = vsub.f32 %v247, %v310
    %v316 = vsub.f32 %v252, %v310
    %v317 = vsub.f32 %v257, %v310
    %v318 = vsub.f32 %v262, %v310
    %v319 = vsub.f32 %v267, %v310
    %v320 = vsub.f32 %v272, %v310
    %v321 = vsub.f32 %v277, %v310
    %v322 = vsub.f32 %v282, %v310
    %v323 = vsub.f32 %v287, %v310
    %v324 = vsub.f32 %v292, %v310
    %v325 = vsub.f32 %v297, %v310
    %v326 = vsub.f32 %v302, %v310
    %v327 = vsub.f32 %v307, %v310
    %v328 = vmul.f32 %v312, %v312
    %v329 = vmul.f32 %v313, %v313
    %v330 = vmul.f32 %v314, %v314
    %v331 = vmul.f32 %v315, %v315
    %v332 = vmul.f32 %v316, %v316
    %v333 = vmul.f32 %v317, %v317
    %v334 = vmul.f32 %v318, %v318
    %v335 = vmul.f32 %v319, %v319
    %v336 = vmul.f32 %v320, %v320
    %v337 = vmul.f32 %v321, %v321
    %v338 = vmul.f32 %v322, %v322
    %v339 = vmul.f32 %v323, %v323
    %v340 = vmul.f32 %v324, %v324
    %v341 = vmul.f32 %v325, %v325
    %v342 = vmul.f32 %v326, %v326
    %v343 = vmul.f32 %v327, %v327
    %v344 = vsel %vm213, %v328, 0.0
    %v345 = vsel %vm214, %v329, 0.0
    %v346 = vsel %vm215, %v330, 0.0
    %v347 = vsel %vm216, %v331, 0.0
    %v348 = vsel %vm217, %v332, 0.0
    %v349 = vsel %vm218, %v333, 0.0
    %v350 = vsel %vm219, %v334, 0.0
    %v351 = vsel %vm220, %v335, 0.0
    %v352 = vsel %vm221, %v336, 0.0
    %v353 = vsel %vm222, %v337, 0.0
    %v354 = vsel %vm223, %v338, 0.0
    %v355 = vsel %vm224, %v339, 0.0
    %v356 = vsel %vm225, %v340, 0.0
    %v357 = vsel %vm226, %v341, 0.0
    %v358 = vsel %vm227, %v342, 0.0
    %v359 = vsel %vm228, %v343, 0.0
    %v360 = vadd.f32 %v344, %v345
    %v361 = vadd.f32 %v360, %v346
    %v362 = vadd.f32 %v361, %v347
    %v363 = vadd.f32 %v362, %v348
    %v364 = vadd.f32 %v363, %v349
    %v365 = vadd.f32 %v364, %v350
    %v366 = vadd.f32 %v365, %v351
    %v367 = vadd.f32 %v366, %v352
    %v368 = vadd.f32 %v367, %v353
    %v369 = vadd.f32 %v368, %v354
    %v370 = vadd.f32 %v369, %v355
    %v371 = vadd.f32 %v370, %v356
    %v372 = vadd.f32 %v371, %v357
    %v373 = vadd.f32 %v372, %v358
    %v374 = vadd.f32 %v373, %v359
    %375 = vadd.xlane.f32.xlu0 %v374
    %v376 = vpop.xlane.xlu0 %375
    %v377 = vrot.slane %v376, 4
    %v378 = vadd.f32 %v376, %v377
    %v379 = vrot.slane %v378, 2
    %v380 = vadd.f32 %v378, %v379
    %v381 = vrot.slane %v380, 1
    %v382 = vadd.f32 %v380, %v381
    %s383 = vtos %v382
    %v384 = vsel %vm213, 1.0, 0.0
    %v385 = vsel %vm214, 1.0, 0.0
    %v386 = vsel %vm215, 1.0, 0.0
    %v387 = vsel %vm216, 1.0, 0.0
    %v388 = vsel %vm217, 1.0, 0.0
    %v389 = vsel %vm218, 1.0, 0.0
    %v390 = vsel %vm219, 1.0, 0.0
    %v391 = vsel %vm220, 1.0, 0.0
    %v392 = vsel %vm221, 1.0, 0.0
    %v393 = vsel %vm222, 1.0, 0.0
    %v394 = vsel %vm223, 1.0, 0.0
    %v395 = vsel %vm224, 1.0, 0.0
    %v396 = vsel %vm225, 1.0, 0.0
    %v397 = vsel %vm226, 1.0, 0.0
    %v398 = vsel %vm227, 1.0, 0.0
    %v399 = vsel %vm228, 1.0, 0.0
    %v400 = vadd.f32 %v384, %v385
    %v401 = vadd.f32 %v400, %v386
    %v402 = vadd.f32 %v401, %v387
    %v403 = vadd.f32 %v402, %v388
    %v404 = vadd.f32 %v403, %v389
    %v405 = vadd.f32 %v404, %v390
    %v406 = vadd.f32 %v405, %v391
    %v407 = vadd.f32 %v406, %v392
    %v408 = vadd.f32 %v407, %v393
    %v409 = vadd.f32 %v408, %v394
    %v410 = vadd.f32 %v409, %v395
    %v411 = vadd.f32 %v410, %v396
    %v412 = vadd.f32 %v411, %v397
    %v413 = vadd.f32 %v412, %v398
    %v414 = vadd.f32 %v413, %v399
    %415 = vadd.xlane.f32.xlu0 %v414
    %v416 = vpop.xlane.xlu0 %415
    %v417 = vrot.slane %v416, 4
    %v418 = vadd.f32 %v416, %v417
    %v419 = vrot.slane %v418, 2
    %v420 = vadd.f32 %v418, %v419
    %v421 = vrot.slane %v420, 1
    %v422 = vadd.f32 %v420, %v421
    %s423 = vtos %v422
    %425 = vset.pattern.permute.xlu0 0
    %426 = vperm.xlu0 %425, %v30
    %v427 = vpop.permute.xlu0 %426
    %430 = vset.pattern.permute.xlu0 0
    %431 = vperm.xlu0 %430, %v31
    %v432 = vpop.permute.xlu0 %431
    %435 = vset.pattern.permute.xlu0 0
    %436 = vperm.xlu0 %435, %v32
    %v437 = vpop.permute.xlu0 %436
    %440 = vset.pattern.permute.xlu0 0
    %441 = vperm.xlu0 %440, %v33
    %v442 = vpop.permute.xlu0 %441
    %445 = vset.pattern.permute.xlu0 0
    %446 = vperm.xlu0 %445, %v34
    %v447 = vpop.permute.xlu0 %446
    %450 = vset.pattern.permute.xlu0 0
    %451 = vperm.xlu0 %450, %v35
    %v452 = vpop.permute.xlu0 %451
    %455 = vset.pattern.permute.xlu0 0
    %456 = vperm.xlu0 %455, %v36
    %v457 = vpop.permute.xlu0 %456
    %460 = vset.pattern.permute.xlu0 0
    %461 = vperm.xlu0 %460, %v37
    %v462 = vpop.permute.xlu0 %461
    %465 = vset.pattern.permute.xlu0 0
    %466 = vperm.xlu0 %465, %v38
    %v467 = vpop.permute.xlu0 %466
    %470 = vset.pattern.permute.xlu0 0
    %471 = vperm.xlu0 %470, %v39
    %v472 = vpop.permute.xlu0 %471
    %475 = vset.pattern.permute.xlu0 0
    %476 = vperm.xlu0 %475, %v40
    %v477 = vpop.permute.xlu0 %476
    %480 = vset.pattern.permute.xlu0 0
    %481 = vperm.xlu0 %480, %v41
    %v482 = vpop.permute.xlu0 %481
    %485 = vset.pattern.permute.xlu0 0
    %486 = vperm.xlu0 %485, %v42
    %v487 = vpop.permute.xlu0 %486
    %490 = vset.pattern.permute.xlu0 0
    %491 = vperm.xlu0 %490, %v43
    %v492 = vpop.permute.xlu0 %491
    %495 = vset.pattern.permute.xlu0 0
    %496 = vperm.xlu0 %495, %v44
    %v497 = vpop.permute.xlu0 %496
    %500 = vset.pattern.permute.xlu0 0
    %501 = vperm.xlu0 %500, %v45
    %v502 = vpop.permute.xlu0 %501
    %v505 = vperm.slane %v94, 0
    %v507 = vsub.f32 %v427, %v505
    %v508 = vsub.f32 %v432, %v505
    %v509 = vsub.f32 %v437, %v505
    %v510 = vsub.f32 %v442, %v505
    %v511 = vsub.f32 %v447, %v505
    %v512 = vsub.f32 %v452, %v505
    %v513 = vsub.f32 %v457, %v505
    %v514 = vsub.f32 %v462, %v505
    %v515 = vsub.f32 %v467, %v505
    %v516 = vsub.f32 %v472, %v505
    %v517 = vsub.f32 %v477, %v505
    %v518 = vsub.f32 %v482, %v505
    %v519 = vsub.f32 %v487, %v505
    %v520 = vsub.f32 %v492, %v505
    %v521 = vsub.f32 %v497, %v505
    %v522 = vsub.f32 %v502, %v505
    %523 = vset.pattern.permute.xlu0 0
    %524 = vperm.xlu0 %523, %v78
    %v525 = vpop.permute.xlu0 %524
    %526 = vset.pattern.permute.xlu0 0
    %527 = vperm.xlu0 %526, %v79
    %v528 = vpop.permute.xlu0 %527
    %529 = vset.pattern.permute.xlu0 0
    %530 = vperm.xlu0 %529, %v80
    %v531 = vpop.permute.xlu0 %530
    %532 = vset.pattern.permute.xlu0 0
    %533 = vperm.xlu0 %532, %v81
    %v534 = vpop.permute.xlu0 %533
    %535 = vset.pattern.permute.xlu0 0
    %536 = vperm.xlu0 %535, %v82
    %v537 = vpop.permute.xlu0 %536
    %538 = vset.pattern.permute.xlu0 0
    %539 = vperm.xlu0 %538, %v83
    %v540 = vpop.permute.xlu0 %539
    %541 = vset.pattern.permute.xlu0 0
    %542 = vperm.xlu0 %541, %v84
    %v543 = vpop.permute.xlu0 %542
    %544 = vset.pattern.permute.xlu0 0
    %545 = vperm.xlu0 %544, %v85
    %v546 = vpop.permute.xlu0 %545
    %547 = vset.pattern.permute.xlu0 0
    %548 = vperm.xlu0 %547, %v86
    %v549 = vpop.permute.xlu0 %548
    %550 = vset.pattern.permute.xlu0 0
    %551 = vperm.xlu0 %550, %v87
    %v552 = vpop.permute.xlu0 %551
    %553 = vset.pattern.permute.xlu0 0
    %554 = vperm.xlu0 %553, %v88
    %v555 = vpop.permute.xlu0 %554
    %556 = vset.pattern.permute.xlu0 0
    %557 = vperm.xlu0 %556, %v89
    %v558 = vpop.permute.xlu0 %557
    %559 = vset.pattern.permute.xlu0 0
    %560 = vperm.xlu0 %559, %v90
    %v561 = vpop.permute.xlu0 %560
    %562 = vset.pattern.permute.xlu0 0
    %563 = vperm.xlu0 %562, %v91
    %v564 = vpop.permute.xlu0 %563
    %565 = vset.pattern.permute.xlu0 0
    %566 = vperm.xlu0 %565, %v92
    %v567 = vpop.permute.xlu0 %566
    %568 = vset.pattern.permute.xlu0 0
    %569 = vperm.xlu0 %568, %v93
    %v570 = vpop.permute.xlu0 %569
    %v571 = vperm.slane %v97, 0
    %vm572 = vcmp.eq.s32.totalorder %v525, %v571
    %vm573 = vcmp.eq.s32.totalorder %v528, %v571
    %vm574 = vcmp.eq.s32.totalorder %v531, %v571
    %vm575 = vcmp.eq.s32.totalorder %v534, %v571
    %vm576 = vcmp.eq.s32.totalorder %v537, %v571
    %vm577 = vcmp.eq.s32.totalorder %v540, %v571
    %vm578 = vcmp.eq.s32.totalorder %v543, %v571
    %vm579 = vcmp.eq.s32.totalorder %v546, %v571
    %vm580 = vcmp.eq.s32.totalorder %v549, %v571
    %vm581 = vcmp.eq.s32.totalorder %v552, %v571
    %vm582 = vcmp.eq.s32.totalorder %v555, %v571
    %vm583 = vcmp.eq.s32.totalorder %v558, %v571
    %vm584 = vcmp.eq.s32.totalorder %v561, %v571
    %vm585 = vcmp.eq.s32.totalorder %v564, %v571
    %vm586 = vcmp.eq.s32.totalorder %v567, %v571
    %vm587 = vcmp.eq.s32.totalorder %v570, %v571
    %vm588 = vmand %vm213, %vm572
    %vm589 = vmand %vm214, %vm573
    %vm590 = vmand %vm215, %vm574
    %vm591 = vmand %vm216, %vm575
    %vm592 = vmand %vm217, %vm576
    %vm593 = vmand %vm218, %vm577
    %vm594 = vmand %vm219, %vm578
    %vm595 = vmand %vm220, %vm579
    %vm596 = vmand %vm221, %vm580
    %vm597 = vmand %vm222, %vm581
    %vm598 = vmand %vm223, %vm582
    %vm599 = vmand %vm224, %vm583
    %vm600 = vmand %vm225, %vm584
    %vm601 = vmand %vm226, %vm585
    %vm602 = vmand %vm227, %vm586
    %vm603 = vmand %vm228, %vm587
    %vm604 = vcmp.gt.f32.partialorder %v181, 0.0
    %vm605 = vcmp.gt.f32.partialorder %v182, 0.0
    %vm606 = vcmp.gt.f32.partialorder %v183, 0.0
    %vm607 = vcmp.gt.f32.partialorder %v184, 0.0
    %vm608 = vcmp.gt.f32.partialorder %v185, 0.0
    %vm609 = vcmp.gt.f32.partialorder %v186, 0.0
    %vm610 = vcmp.gt.f32.partialorder %v187, 0.0
    %vm611 = vcmp.gt.f32.partialorder %v188, 0.0
    %vm612 = vcmp.gt.f32.partialorder %v189, 0.0
    %vm613 = vcmp.gt.f32.partialorder %v190, 0.0
    %vm614 = vcmp.gt.f32.partialorder %v191, 0.0
    %vm615 = vcmp.gt.f32.partialorder %v192, 0.0
    %vm616 = vcmp.gt.f32.partialorder %v193, 0.0
    %vm617 = vcmp.gt.f32.partialorder %v194, 0.0
    %vm618 = vcmp.gt.f32.partialorder %v195, 0.0
    %vm619 = vcmp.gt.f32.partialorder %v196, 0.0
    %v620 = vsub.f32 0.0, %v507
    %v621 = vsub.f32 0.0, %v508
    %v622 = vsub.f32 0.0, %v509
    %v623 = vsub.f32 0.0, %v510
    %v624 = vsub.f32 0.0, %v511
    %v625 = vsub.f32 0.0, %v512
    %v626 = vsub.f32 0.0, %v513
    %v627 = vsub.f32 0.0, %v514
    %v628 = vsub.f32 0.0, %v515
    %v629 = vsub.f32 0.0, %v516
    %v630 = vsub.f32 0.0, %v517
    %v631 = vsub.f32 0.0, %v518
    %v632 = vsub.f32 0.0, %v519
    %v633 = vsub.f32 0.0, %v520
    %v634 = vsub.f32 0.0, %v521
    %v635 = vsub.f32 0.0, %v522
    %v636 = vsel %vm604, %v507, %v620
    %v637 = vsel %vm605, %v508, %v621
    %v638 = vsel %vm606, %v509, %v622
    %v639 = vsel %vm607, %v510, %v623
    %v640 = vsel %vm608, %v511, %v624
    %v641 = vsel %vm609, %v512, %v625
    %v642 = vsel %vm610, %v513, %v626
    %v643 = vsel %vm611, %v514, %v627
    %v644 = vsel %vm612, %v515, %v628
    %v645 = vsel %vm613, %v516, %v629
    %v646 = vsel %vm614, %v517, %v630
    %v647 = vsel %vm615, %v518, %v631
    %v648 = vsel %vm616, %v519, %v632
    %v649 = vsel %vm617, %v520, %v633
    %v650 = vsel %vm618, %v521, %v634
    %v651 = vsel %vm619, %v522, %v635
    %v652 = vsub.f32 0.0, %v636
    %v653 = vsub.f32 0.0, %v637
    %v654 = vsub.f32 0.0, %v638
    %v655 = vsub.f32 0.0, %v639
    %v656 = vsub.f32 0.0, %v640
    %v657 = vsub.f32 0.0, %v641
    %v658 = vsub.f32 0.0, %v642
    %v659 = vsub.f32 0.0, %v643
    %v660 = vsub.f32 0.0, %v644
    %v661 = vsub.f32 0.0, %v645
    %v662 = vsub.f32 0.0, %v646
    %v663 = vsub.f32 0.0, %v647
    %v664 = vsub.f32 0.0, %v648
    %v665 = vsub.f32 0.0, %v649
    %v666 = vsub.f32 0.0, %v650
    %v667 = vsub.f32 0.0, %v651
    %v668 = vmax.f32 %v652, 0.0
    %v669 = vmax.f32 %v653, 0.0
    %v670 = vmax.f32 %v654, 0.0
    %v671 = vmax.f32 %v655, 0.0
    %v672 = vmax.f32 %v656, 0.0
    %v673 = vmax.f32 %v657, 0.0
    %v674 = vmax.f32 %v658, 0.0
    %v675 = vmax.f32 %v659, 0.0
    %v676 = vmax.f32 %v660, 0.0
    %v677 = vmax.f32 %v661, 0.0
    %v678 = vmax.f32 %v662, 0.0
    %v679 = vmax.f32 %v663, 0.0
    %v680 = vmax.f32 %v664, 0.0
    %v681 = vmax.f32 %v665, 0.0
    %v682 = vmax.f32 %v666, 0.0
    %v683 = vmax.f32 %v667, 0.0
    %v684 = vmul.f32 %v668, %v197
    %v685 = vmul.f32 %v669, %v198
    %v686 = vmul.f32 %v670, %v199
    %v687 = vmul.f32 %v671, %v200
    %v688 = vmul.f32 %v672, %v201
    %v689 = vmul.f32 %v673, %v202
    %v690 = vmul.f32 %v674, %v203
    %v691 = vmul.f32 %v675, %v204
    %v692 = vmul.f32 %v676, %v205
    %v693 = vmul.f32 %v677, %v206
    %v694 = vmul.f32 %v678, %v207
    %v695 = vmul.f32 %v679, %v208
    %v696 = vmul.f32 %v680, %v209
    %v697 = vmul.f32 %v681, %v210
    %v698 = vmul.f32 %v682, %v211
    %v699 = vmul.f32 %v683, %v212
    %v700 = vsel %vm588, %v684, 0.0
    %v701 = vsel %vm589, %v685, 0.0
    %v702 = vsel %vm590, %v686, 0.0
    %v703 = vsel %vm591, %v687, 0.0
    %v704 = vsel %vm592, %v688, 0.0
    %v705 = vsel %vm593, %v689, 0.0
    %v706 = vsel %vm594, %v690, 0.0
    %v707 = vsel %vm595, %v691, 0.0
    %v708 = vsel %vm596, %v692, 0.0
    %v709 = vsel %vm597, %v693, 0.0
    %v710 = vsel %vm598, %v694, 0.0
    %v711 = vsel %vm599, %v695, 0.0
    %v712 = vsel %vm600, %v696, 0.0
    %v713 = vsel %vm601, %v697, 0.0
    %v714 = vsel %vm602, %v698, 0.0
    %v715 = vsel %vm603, %v699, 0.0
    %v716 = vadd.f32 %v700, %v701
    %v717 = vadd.f32 %v716, %v702
    %v718 = vadd.f32 %v717, %v703
    %v719 = vadd.f32 %v718, %v704
    %v720 = vadd.f32 %v719, %v705
    %v721 = vadd.f32 %v720, %v706
    %v722 = vadd.f32 %v721, %v707
    %v723 = vadd.f32 %v722, %v708
    %v724 = vadd.f32 %v723, %v709
    %v725 = vadd.f32 %v724, %v710
    %v726 = vadd.f32 %v725, %v711
    %v727 = vadd.f32 %v726, %v712
    %v728 = vadd.f32 %v727, %v713
    %v729 = vadd.f32 %v728, %v714
    %v730 = vadd.f32 %v729, %v715
    %731 = vadd.xlane.f32.xlu0 %v730
    %v732 = vpop.xlane.xlu0 %731
    %v733 = vrot.slane %v732, 4
    %v734 = vadd.f32 %v732, %v733
    %v735 = vrot.slane %v734, 2
    %v736 = vadd.f32 %v734, %v735
    %v737 = vrot.slane %v736, 1
    %v738 = vadd.f32 %v736, %v737
    %s739 = vtos %v738
    %v740 = vsel %vm588, 1.0, 0.0
    %v741 = vsel %vm589, 1.0, 0.0
    %v742 = vsel %vm590, 1.0, 0.0
    %v743 = vsel %vm591, 1.0, 0.0
    %v744 = vsel %vm592, 1.0, 0.0
    %v745 = vsel %vm593, 1.0, 0.0
    %v746 = vsel %vm594, 1.0, 0.0
    %v747 = vsel %vm595, 1.0, 0.0
    %v748 = vsel %vm596, 1.0, 0.0
    %v749 = vsel %vm597, 1.0, 0.0
    %v750 = vsel %vm598, 1.0, 0.0
    %v751 = vsel %vm599, 1.0, 0.0
    %v752 = vsel %vm600, 1.0, 0.0
    %v753 = vsel %vm601, 1.0, 0.0
    %v754 = vsel %vm602, 1.0, 0.0
    %v755 = vsel %vm603, 1.0, 0.0
    %v756 = vadd.f32 %v740, %v741
    %v757 = vadd.f32 %v756, %v742
    %v758 = vadd.f32 %v757, %v743
    %v759 = vadd.f32 %v758, %v744
    %v760 = vadd.f32 %v759, %v745
    %v761 = vadd.f32 %v760, %v746
    %v762 = vadd.f32 %v761, %v747
    %v763 = vadd.f32 %v762, %v748
    %v764 = vadd.f32 %v763, %v749
    %v765 = vadd.f32 %v764, %v750
    %v766 = vadd.f32 %v765, %v751
    %v767 = vadd.f32 %v766, %v752
    %v768 = vadd.f32 %v767, %v753
    %v769 = vadd.f32 %v768, %v754
    %v770 = vadd.f32 %v769, %v755
    %771 = vadd.xlane.f32.xlu0 %v770
    %v772 = vpop.xlane.xlu0 %771
    %v773 = vrot.slane %v772, 4
    %v774 = vadd.f32 %v772, %v773
    %v775 = vrot.slane %v774, 2
    %v776 = vadd.f32 %v774, %v775
    %v777 = vrot.slane %v776, 1
    %v778 = vadd.f32 %v776, %v777
    %s779 = vtos %v778
    %v780 = vstv %s383
    %781 = vst [vmem:[#allocation2] sm:$0x1] %v780
    %v782 = vstv %s423
    %783 = vst [vmem:[#allocation2 + $0x1] sm:$0x1] %v782
    %v784 = vstv %s739
    %785 = vst [vmem:[#allocation2 + $0x2] sm:$0x1] %v784
    %v786 = vstv %s779
    %787 = vst [vmem:[#allocation2 + $0x3] sm:$0x1] %v786
    // Predicated region
    $region34: #{tpu_custom_call.1} parent=1 // pred_check
      _
    $region35: #{tpu_custom_call.1} parent=1 // pred_check_branch
      %789 = sbr.rel (0) target = $region37
    $region36: #{tpu_custom_call.1} parent=1 // pred_region
      %791 = vsyncadd [#allocation3], 0
      %s793 = sshll.u32 [#allocation2], 4
      %s794 = int_to_ptr.vmem [resolvable:$true] %s793
      %s795 = sshll.u32 %s8, 4
      %s796 = int_to_ptr.hbm [resolvable:$true] %s795
      %798 = dma.vmem_to_hbm [thread:$0]  %s794, 64, %s796, [#allocation3]
    $region37: #{tpu_custom_call.1} parent=1 // pred_fallthru
      _
    // Predicated region
    $region38: #{tpu_custom_call.1} parent=1 // pred_check
      _
    $region39: #{tpu_custom_call.1} parent=1 // pred_check_branch
      %800 = sbr.rel (0) target = $region41
    $region40: #{tpu_custom_call.1} parent=1 // pred_region
      %802 = dma.done [#allocation3], 64
    $region41: #{tpu_custom_call.1} parent=1 // pred_fallthru
      _
    %803 = vsyncpa [#allocation3], 1

</llo_original>
